<compile_context>
chip_gen: v7x
topology: tpu7x:2x2x1
jax: 0.10.0
libtpu: 0.0.40
codegen_flags: <defaults>
</compile_context>

<pallas_src>
import jax
import jax.numpy as jnp
from jax.experimental import pallas as pl
from jax.experimental.pallas import tpu as pltpu


def critic_kernel(s_ref, a_ref, w1s_ref, w1a_ref, b1_ref, w2_ref, b2_ref,
                  w3_ref, b3_ref, o_ref):
    # Layer 1: fused "concat" via split matmul. bf16 operands -> MXU, f32 accumulate.
    s = s_ref[...].astype(jnp.bfloat16)                       # [TM, S]
    a = a_ref[...].astype(jnp.bfloat16)                       # [TM, A]
    h1 = (jnp.dot(s, w1s_ref[...], preferred_element_type=jnp.float32)
          + jnp.dot(a, w1a_ref[...], preferred_element_type=jnp.float32)
          + b1_ref[...])                                      # [TM, 128] f32
    h1 = jnp.maximum(h1, 0.0)

    # Layer 2: bf16 operands, f32 accumulate, f32 bias/ReLU.
    h2 = jnp.dot(h1.astype(jnp.bfloat16), w2_ref[...],
                 preferred_element_type=jnp.float32) + b2_ref[...]   # [TM, 256] f32
    h2 = jnp.maximum(h2, 0.0)

    # Layer 3 (out_features = 1): VPU multiply + cross-lane reduce instead of an
    # N=1 MXU matmul. w3 is a [1, 256] f32 row, b3 is an SMEM scalar.
    out = jnp.sum(h2 * w3_ref[...], axis=-1, keepdims=True) + b3_ref[0, 0]  # [TM, 1]
    o_ref[...] = out.astype(o_ref.dtype)


def critic_forward(state, action, params, *, tm=None):
    """Forward pass of the Critic. Single pallas_call, batch-tiled grid."""
    w1_s, w1_a, b1, w2, b2, w3, b3 = params
    state = state.astype(jnp.float32)
    action = action.astype(jnp.float32)
    B, S = state.shape
    A = action.shape[1]

    if tm is None:
        # Largest-that-fits batch tile; 256 rows keeps per-iter activation buffers
        # well under v7x's 32 MiB default scoped VMEM (raise vmem_limit_bytes to go bigger).
        tm = B if B <= 256 else 256
    grid = (pl.cdiv(B, tm),)

    # Activations: tiled along the batch axis.
    act = lambda cols: pl.BlockSpec((tm, cols), lambda i: (i, 0))
    # Weights / biases: constant block index -> fetched once, VMEM-resident across the grid.
    res = lambda shape: pl.BlockSpec(shape, lambda i: (0,) * len(shape))

    return pl.pallas_call(
        critic_kernel,
        out_shape=jax.ShapeDtypeStruct((B, 1), jnp.float32),
        grid=grid,
        in_specs=[
            act(S),                     # state  [B, S]
            act(A),                     # action [B, A]
            res(w1_s.shape),            # [S, 128]  bf16
            res(w1_a.shape),            # [A, 128]  bf16
            res(b1.shape),              # [1, 128]  f32
            res(w2.shape),              # [128, 256] bf16
            res(b2.shape),              # [1, 256]  f32
            res(w3.shape),              # [1, 256]  f32
            pl.BlockSpec((1, 1), lambda i: (0, 0),
                         memory_space=pltpu.MemorySpace.SMEM),   # b3 scalar in SMEM
        ],
        out_specs=pl.BlockSpec((tm, 1), lambda i: (i, 0)),
        compiler_params=pltpu.CompilerParams(
            dimension_semantics=("parallel",),
        ),
    )(state, action, w1_s, w1_a, b1, w2, b2, w3, b3)


def init_critic_params(key, state_dim, action_dim):
    """PyTorch nn.Linear default init: U(-1/sqrt(fan_in), 1/sqrt(fan_in)) for W and b.
    Stored in the kernel layout: W1 split across the concat boundary (bf16), W2 bf16,
    W3 as a [1, 256] f32 row, biases f32 (b3 is a (1,1) scalar for SMEM)."""
    def linear(k, fan_in, fan_out):
        kw, kb = jax.random.split(k)
        bound = 1.0 / jnp.sqrt(float(fan_in))
        w = jax.random.uniform(kw, (fan_in, fan_out), jnp.float32, -bound, bound)
        b = jax.random.uniform(kb, (1, fan_out), jnp.float32, -bound, bound)
        return w, b

    k1, k2, k3 = jax.random.split(key, 3)
    w1, b1 = linear(k1, state_dim + action_dim, 128)
    w2, b2 = linear(k2, 128, 256)
    w3, b3 = linear(k3, 256, 1)

    return (
        w1[:state_dim].astype(jnp.bfloat16),   # w1_s [S, 128]
        w1[state_dim:].astype(jnp.bfloat16),   # w1_a [A, 128]
        b1,                                    # [1, 128]
        w2.astype(jnp.bfloat16),               # [128, 256]
        b2,                                    # [1, 256]
        w3.T,                                  # [1, 256] f32 (row for VPU multiply)
        b3,                                    # [1, 1]  f32
    )


def critic_reference(state, action, params):
    """Pure-JAX f32 reference matching the PyTorch module semantics
    (same numerical weights; kernel uses bf16 MXU operands -> loose tolerance)."""
    w1_s, w1_a, b1, w2, b2, w3, b3 = params
    x = jnp.concatenate([state, action], axis=1).astype(jnp.float32)
    w1 = jnp.concatenate([w1_s, w1_a], axis=0).astype(jnp.float32)
    h1 = jnp.maximum(x @ w1 + b1, 0.0)
    h2 = jnp.maximum(h1 @ w2.astype(jnp.float32) + b2, 0.0)
    return h2 @ w3.T + b3


if __name__ == "__main__":
    state_dim, action_dim, batch = 16, 4, 8

    key = jax.random.PRNGKey(0)
    kp, ks, ka = jax.random.split(key, 3)
    params = init_critic_params(kp, state_dim, action_dim)
    state = jax.random.normal(ks, (batch, state_dim), jnp.float32)
    action = jax.random.normal(ka, (batch, action_dim), jnp.float32)

    out = critic_forward(state, action, params)
    out = jax.block_until_ready(out)

    ref = critic_reference(state, action, params)
    assert out.shape == (batch, 1), out.shape
    assert jnp.allclose(out, ref, atol=2e-2, rtol=2e-2), "mismatch vs reference"

    print("KERNEL_OK")
</pallas_src>

<mosaic_0001>
module attributes {stable_mosaic.version = 11 : i64} {
  func.func @critic_kernel(%arg0: i32, %arg1: memref<8x16xf32, #tpu.memory_space<vmem>>, %arg2: memref<8x4xf32, #tpu.memory_space<vmem>>, %arg3: memref<16x128xbf16, #tpu.memory_space<vmem>>, %arg4: memref<4x128xbf16, #tpu.memory_space<vmem>>, %arg5: memref<1x128xf32, #tpu.memory_space<vmem>>, %arg6: memref<128x256xbf16, #tpu.memory_space<vmem>>, %arg7: memref<1x256xf32, #tpu.memory_space<vmem>>, %arg8: memref<1x256xf32, #tpu.memory_space<vmem>>, %arg9: memref<1x1xf32, #tpu.memory_space<smem>>, %arg10: memref<8x1xf32, #tpu.memory_space<vmem>>) attributes {dimension_semantics = [#tpu.dimension_semantics<parallel>], iteration_bounds = array<i64: 1>, scalar_prefetch = 0 : i64, scratch_operands = 0 : i64, tpu.core_type = #tpu.core_type<tc>, window_params = [{transform_indices = @transform_0, window_bounds = array<i64: 8, 16>}, {transform_indices = @transform_1, window_bounds = array<i64: 8, 4>}, {pipeline_mode = #tpu.pipeline_mode<synchronous>, transform_indices = @transform_2, window_bounds = array<i64: 16, 128>}, {pipeline_mode = #tpu.pipeline_mode<synchronous>, transform_indices = @transform_3, window_bounds = array<i64: 4, 128>}, {pipeline_mode = #tpu.pipeline_mode<synchronous>, transform_indices = @transform_4, window_bounds = array<i64: 1, 128>}, {pipeline_mode = #tpu.pipeline_mode<synchronous>, transform_indices = @transform_5, window_bounds = array<i64: 128, 256>}, {pipeline_mode = #tpu.pipeline_mode<synchronous>, transform_indices = @transform_6, window_bounds = array<i64: 1, 256>}, {pipeline_mode = #tpu.pipeline_mode<synchronous>, transform_indices = @transform_7, window_bounds = array<i64: 1, 256>}, {transform_indices = @transform_8, window_bounds = array<i64: 1, 1>}, {transform_indices = @transform_9, window_bounds = array<i64: 8, 1>}]} {
    %c0 = arith.constant 0 : index
    %c0_0 = arith.constant 0 : index
    %0 = vector.load %arg1[%c0, %c0_0] : memref<8x16xf32, #tpu.memory_space<vmem>>, vector<8x16xf32>
    %1 = arith.truncf %0 : vector<8x16xf32> to vector<8x16xbf16>
    %c0_1 = arith.constant 0 : index
    %c0_2 = arith.constant 0 : index
    %2 = vector.load %arg2[%c0_1, %c0_2] : memref<8x4xf32, #tpu.memory_space<vmem>>, vector<8x4xf32>
    %3 = arith.truncf %2 : vector<8x4xf32> to vector<8x4xbf16>
    %c0_3 = arith.constant 0 : index
    %c0_4 = arith.constant 0 : index
    %4 = vector.load %arg3[%c0_3, %c0_4] : memref<16x128xbf16, #tpu.memory_space<vmem>>, vector<16x128xbf16>
    %cst = arith.constant dense<0.000000e+00> : vector<8x128xf32>
    %5 = tpu.matmul %1, %4, %cst {dimension_numbers = #tpu.dot_dimension_numbers<[1], [0], [0], [1], [0, 0, 1, 1], [], []>} : vector<8x16xbf16>, vector<16x128xbf16>, vector<8x128xf32> -> vector<8x128xf32>
    %c0_5 = arith.constant 0 : index
    %c0_6 = arith.constant 0 : index
    %6 = vector.load %arg4[%c0_5, %c0_6] : memref<4x128xbf16, #tpu.memory_space<vmem>>, vector<4x128xbf16>
    %cst_7 = arith.constant dense<0.000000e+00> : vector<8x128xf32>
    %7 = tpu.matmul %3, %6, %cst_7 {dimension_numbers = #tpu.dot_dimension_numbers<[1], [0], [0], [1], [0, 0, 1, 1], [], []>} : vector<8x4xbf16>, vector<4x128xbf16>, vector<8x128xf32> -> vector<8x128xf32>
    %8 = arith.addf %5, %7 : vector<8x128xf32>
    %c0_8 = arith.constant 0 : index
    %c0_9 = arith.constant 0 : index
    %9 = vector.load %arg5[%c0_8, %c0_9] : memref<1x128xf32, #tpu.memory_space<vmem>>, vector<1x128xf32>
    %10 = vector.broadcast %9 : vector<1x128xf32> to vector<8x128xf32>
    %11 = arith.addf %8, %10 : vector<8x128xf32>
    %cst_10 = arith.constant 0.000000e+00 : f32
    %12 = vector.broadcast %cst_10 : f32 to vector<8x128xf32>
    %13 = arith.maximumf %11, %12 : vector<8x128xf32>
    %14 = arith.truncf %13 : vector<8x128xf32> to vector<8x128xbf16>
    %c0_11 = arith.constant 0 : index
    %c0_12 = arith.constant 0 : index
    %15 = vector.load %arg6[%c0_11, %c0_12] : memref<128x256xbf16, #tpu.memory_space<vmem>>, vector<128x256xbf16>
    %cst_13 = arith.constant dense<0.000000e+00> : vector<8x256xf32>
    %16 = tpu.matmul %14, %15, %cst_13 {dimension_numbers = #tpu.dot_dimension_numbers<[1], [0], [0], [1], [0, 0, 1, 1], [], []>} : vector<8x128xbf16>, vector<128x256xbf16>, vector<8x256xf32> -> vector<8x256xf32>
    %c0_14 = arith.constant 0 : index
    %c0_15 = arith.constant 0 : index
    %17 = vector.load %arg7[%c0_14, %c0_15] : memref<1x256xf32, #tpu.memory_space<vmem>>, vector<1x256xf32>
    %18 = vector.broadcast %17 : vector<1x256xf32> to vector<8x256xf32>
    %19 = arith.addf %16, %18 : vector<8x256xf32>
    %cst_16 = arith.constant 0.000000e+00 : f32
    %20 = vector.broadcast %cst_16 : f32 to vector<8x256xf32>
    %21 = arith.maximumf %19, %20 : vector<8x256xf32>
    %c0_17 = arith.constant 0 : index
    %c0_18 = arith.constant 0 : index
    %22 = vector.load %arg8[%c0_17, %c0_18] : memref<1x256xf32, #tpu.memory_space<vmem>>, vector<1x256xf32>
    %23 = vector.broadcast %22 : vector<1x256xf32> to vector<8x256xf32>
    %24 = arith.mulf %21, %23 : vector<8x256xf32>
    %cst_19 = arith.constant dense<0.000000e+00> : vector<8xf32>
    %25 = vector.multi_reduction <add>, %24, %cst_19 [1] : vector<8x256xf32> to vector<8xf32>
    %26 = vector.shape_cast %25 : vector<8xf32> to vector<8x1xf32>
    %c0_20 = arith.constant 0 : index
    %c0_21 = arith.constant 0 : index
    %27 = memref.load %arg9[%c0_20, %c0_21] : memref<1x1xf32, #tpu.memory_space<smem>>
    %28 = vector.broadcast %27 : f32 to vector<8x1xf32>
    %29 = arith.addf %26, %28 : vector<8x1xf32>
    %c0_22 = arith.constant 0 : index
    %c0_23 = arith.constant 0 : index
    %30 = vector.load %arg10[%c0_22, %c0_23] : memref<8x1xf32, #tpu.memory_space<vmem>>, vector<8x1xf32>
    tpu.vector_store %arg10[%c0_22, %c0_23], %29 {strides = array<i32>} : memref<8x1xf32, #tpu.memory_space<vmem>>, vector<8x1xf32>,
    return
  }
  func.func @transform_0(%arg0: i32) -> (i32, i32) {
    %c0_i32 = arith.constant 0 : i32
    %c0_i32_0 = arith.constant 0 : i32
    return %arg0, %c0_i32 : i32, i32
  }
  func.func @transform_1(%arg0: i32) -> (i32, i32) {
    %c0_i32 = arith.constant 0 : i32
    %c0_i32_0 = arith.constant 0 : i32
    return %arg0, %c0_i32 : i32, i32
  }
  func.func @transform_2(%arg0: i32) -> (i32, i32) {
    %c0_i32 = arith.constant 0 : i32
    %c0_i32_0 = arith.constant 0 : i32
    %c0_i32_1 = arith.constant 0 : i32
    return %c0_i32, %c0_i32_0 : i32, i32
  }
  func.func @transform_3(%arg0: i32) -> (i32, i32) {
    %c0_i32 = arith.constant 0 : i32
    %c0_i32_0 = arith.constant 0 : i32
    %c0_i32_1 = arith.constant 0 : i32
    return %c0_i32, %c0_i32_0 : i32, i32
  }
  func.func @transform_4(%arg0: i32) -> (i32, i32) {
    %c0_i32 = arith.constant 0 : i32
    %c0_i32_0 = arith.constant 0 : i32
    %c0_i32_1 = arith.constant 0 : i32
    return %c0_i32, %c0_i32_0 : i32, i32
  }
  func.func @transform_5(%arg0: i32) -> (i32, i32) {
    %c0_i32 = arith.constant 0 : i32
    %c0_i32_0 = arith.constant 0 : i32
    %c0_i32_1 = arith.constant 0 : i32
    return %c0_i32, %c0_i32_0 : i32, i32
  }
  func.func @transform_6(%arg0: i32) -> (i32, i32) {
    %c0_i32 = arith.constant 0 : i32
    %c0_i32_0 = arith.constant 0 : i32
    %c0_i32_1 = arith.constant 0 : i32
    return %c0_i32, %c0_i32_0 : i32, i32
  }
  func.func @transform_7(%arg0: i32) -> (i32, i32) {
    %c0_i32 = arith.constant 0 : i32
    %c0_i32_0 = arith.constant 0 : i32
    %c0_i32_1 = arith.constant 0 : i32
    return %c0_i32, %c0_i32_0 : i32, i32
  }
  func.func @transform_8(%arg0: i32) -> (i32, i32) {
    %c0_i32 = arith.constant 0 : i32
    %c0_i32_0 = arith.constant 0 : i32
    %c0_i32_1 = arith.constant 0 : i32
    return %c0_i32, %c0_i32_0 : i32, i32
  }
  func.func @transform_9(%arg0: i32) -> (i32, i32) {
    %c0_i32 = arith.constant 0 : i32
    %c0_i32_0 = arith.constant 0 : i32
    return %arg0, %c0_i32 : i32, i32
  }
}

</mosaic_0001>

<llo_original>
// kernel: tpu_custom_call.1
$region0: #{tpu_custom_call.1}
  #allocation0 [shape = 'u32[]', space=smem, size = 0x4, offset = 0x4, fixed_abs, tag = 'smem constant byte address 0x4 - core index']
  #allocation1 [shape = 'u32[144,128]{1,0:T(1,128)}', space=vmem, size = 0x12000, scoped, tag = 'internal scratch']
  #allocation2 [shape = 'f32[1,1]{1,0:T(1,128)S(6)}', space=smem, size = 0x200, scoped, tag = 'scoped memory for tpu_custom_call.1']
  %s0 = inlined_call_operand.vmem [shape: f32[8,16], index: 0, kind: input, shape index: {}]
  %s1 = inlined_call_operand.vmem [shape: f32[8,4], index: 1, kind: input, shape index: {}]
  %s2 = inlined_call_operand.vmem [shape: bf16[16,128], index: 2, kind: input, shape index: {}]
  %s3 = inlined_call_operand.vmem [shape: bf16[4,128], index: 3, kind: input, shape index: {}]
  %s4 = inlined_call_operand.vmem [shape: f32[1,128], index: 4, kind: input, shape index: {}]
  %s5 = inlined_call_operand.hbm [shape: bf16[128,256], index: 5, kind: input, shape index: {}]
  %s6 = inlined_call_operand.vmem [shape: f32[1,256], index: 6, kind: input, shape index: {}]
  %s7 = inlined_call_operand.vmem [shape: f32[1,256], index: 7, kind: input, shape index: {}]
  %s8 = inlined_call_operand.<no memory space> [shape: f32[1,1], index: 8, kind: input, shape index: {}]
  %s9 = inlined_call_operand.vmem [shape: f32[8,1], index: 9, kind: output, shape index: {}]
  %s10 = sld [smem:[#allocation0]]
  $region50: #{tpu_custom_call.1} parent=0
    _
  %s12 = ssub.s32 1, %s10
  %s13 = scalar_select 0, %s12, %s10
  %14 = sst [smem:[#allocation2]] %s8
  $region1: #{tpu_custom_call.1} parent=0
    #allocation3 [shape = 'u8[65536]{0}', space=vmem, size = 0x10000, scoped, tag = 'input window, operand 5, single buffered']
    #allocation4 [shape = 's32[1]{0}', space=sflag, size = 0x4, scoped, tag = 'scoped memory for tpu_custom_call.1']
    %15 = vsyncpa [#allocation4], 0
    // Predicated region
    $region2: #{tpu_custom_call.1} parent=1 // pred_check
      _
    $region3: #{tpu_custom_call.1} parent=1 // pred_check_branch
      %17 = sbr.rel (0) target = $region5
    $region4: #{tpu_custom_call.1} parent=1 // pred_region
      _
    $region5: #{tpu_custom_call.1} parent=1 // pred_fallthru
      _
    // Predicated region
    $region6: #{tpu_custom_call.1} parent=1 // pred_check
      _
    $region7: #{tpu_custom_call.1} parent=1 // pred_check_branch
      %19 = sbr.rel (0) target = $region9
    $region8: #{tpu_custom_call.1} parent=1 // pred_region
      _
    $region9: #{tpu_custom_call.1} parent=1 // pred_fallthru
      _
    // Predicated region
    $region10: #{tpu_custom_call.1} parent=1 // pred_check
      _
    $region11: #{tpu_custom_call.1} parent=1 // pred_check_branch
      %21 = sbr.rel (0) target = $region13
    $region12: #{tpu_custom_call.1} parent=1 // pred_region
      _
    $region13: #{tpu_custom_call.1} parent=1 // pred_fallthru
      _
    // Predicated region
    $region14: #{tpu_custom_call.1} parent=1 // pred_check
      _
    $region15: #{tpu_custom_call.1} parent=1 // pred_check_branch
      %23 = sbr.rel (0) target = $region17
    $region16: #{tpu_custom_call.1} parent=1 // pred_region
      _
    $region17: #{tpu_custom_call.1} parent=1 // pred_fallthru
      _
    // Predicated region
    $region18: #{tpu_custom_call.1} parent=1 // pred_check
      _
    $region19: #{tpu_custom_call.1} parent=1 // pred_check_branch
      %25 = sbr.rel (0) target = $region21
    $region20: #{tpu_custom_call.1} parent=1 // pred_region
      _
    $region21: #{tpu_custom_call.1} parent=1 // pred_fallthru
      _
    // Predicated region
    $region22: #{tpu_custom_call.1} parent=1 // pred_check
      _
    $region23: #{tpu_custom_call.1} parent=1 // pred_check_branch
      %27 = sbr.rel (0) target = $region25
    $region24: #{tpu_custom_call.1} parent=1 // pred_region
      %s29 = ssub.s32 2048, 2048
      %30 = vsyncadd [#allocation4], %s29
      %s31 = sshll.u32 [#allocation3], 4
      %s32 = int_to_ptr.vmem [resolvable:$true] %s31
      %37 = dma.hbm_to_vmem [thread:$0]  %s5, 2048, %s32, [#allocation4], 128, 128, 8
    $region25: #{tpu_custom_call.1} parent=1 // pred_fallthru
      _
    // Predicated region
    $region26: #{tpu_custom_call.1} parent=1 // pred_check
      _
    $region27: #{tpu_custom_call.1} parent=1 // pred_check_branch
      %39 = sbr.rel (0) target = $region29
    $region28: #{tpu_custom_call.1} parent=1 // pred_region
      _
    $region29: #{tpu_custom_call.1} parent=1 // pred_fallthru
      _
    // Predicated region
    $region30: #{tpu_custom_call.1} parent=1 // pred_check
      _
    $region31: #{tpu_custom_call.1} parent=1 // pred_check_branch
      %41 = sbr.rel (0) target = $region33
    $region32: #{tpu_custom_call.1} parent=1 // pred_region
      _
    $region33: #{tpu_custom_call.1} parent=1 // pred_fallthru
      _
    // Predicated region
    $region34: #{tpu_custom_call.1} parent=1 // pred_check
      _
    $region35: #{tpu_custom_call.1} parent=1 // pred_check_branch
      %43 = sbr.rel (0) target = $region37
    $region36: #{tpu_custom_call.1} parent=1 // pred_region
      _
    $region37: #{tpu_custom_call.1} parent=1 // pred_fallthru
      _
    // Predicated region
    $region38: #{tpu_custom_call.1} parent=1 // pred_check
      _
    $region39: #{tpu_custom_call.1} parent=1 // pred_check_branch
      %45 = sbr.rel (0) target = $region41
    $region40: #{tpu_custom_call.1} parent=1 // pred_region
      %46 = dma.done [#allocation4], 2048
    $region41: #{tpu_custom_call.1} parent=1 // pred_fallthru
      _
    %v48 = vld [vmem:[%s0] sm:$0xff]
    %v49 = vpack.c.bf16 %v48, %v48
    %v50 = vld [vmem:[%s1] sm:$0xff]
    %v51 = vpack.c.bf16 %v50, %v50
    %v52 = vld [vmem:[%s2] sm:$0xf]
    %v53 = vld [vmem:[%s2 + $0x4] sm:$0xf]
    %v54 = vld [vmem:[%s3] sm:$0x3]
    %vm55 = vcmask 31744
    %v57 = vsel %vm55, %v51, 0
    %vm59 = vcmask 1041408
    %v61 = vsel %vm59, %v54, 0
    %63 = vmatprep.subr.bf16.mxu0 0
    %64 = vmatpush1.bf16.msra.mxu0 %v61
    %65 = vmatprep.subr.bf16.mxu0 0
    %66 = vmatpush1.bf16.msra.mxu0 0
    %67 = vmatprep.subr.bf16.mxu0 0
    %68 = vmatpush1.bf16.msra.mxu0 0
    %69 = vmatprep.subr.bf16.mxu0 0
    %70 = vmatpush1.bf16.msra.mxu0 0
    %71 = vmatprep.subr.bf16.mxu0 0
    %72 = vmatpush1.bf16.msra.mxu0 0
    %73 = vmatprep.subr.bf16.mxu0 0
    %74 = vmatpush1.bf16.msra.mxu0 0
    %75 = vmatprep.subr.bf16.mxu0 0
    %76 = vmatpush1.bf16.msra.mxu0 0
    %77 = vmatprep.subr.bf16.mxu0 0
    %78 = vmatpush1.bf16.msra.mxu0 0
    %79 = vmatprep.subr.bf16.mxu0 0
    %80 = vmatpush1.bf16.msra.mxu0 0
    %81 = vmatprep.subr.bf16.mxu0 0
    %82 = vmatpush1.bf16.msra.mxu0 0
    %83 = vmatprep.subr.bf16.mxu0 0
    %84 = vmatpush1.bf16.msra.mxu0 0
    %85 = vmatprep.subr.bf16.mxu0 0
    %86 = vmatpush1.bf16.msra.mxu0 0
    %87 = vmatprep.subr.bf16.mxu0 0
    %88 = vmatpush1.bf16.msra.mxu0 0
    %89 = vmatprep.subr.bf16.mxu0 0
    %90 = vmatpush1.bf16.msra.mxu0 0
    %91 = vmatprep.subr.bf16.mxu0 0
    %92 = vmatpush1.bf16.msra.mxu0 0
    %93 = vmatprep.subr.bf16.mxu0 0
    %94 = vmatpush1.bf16.msra.mxu0 0
    %95 = vmatprep.mubr.bf16.mxu0 0
    %96 = vmatmul.mubr.bf16.gmra.mrb[0].mxu0 %v57
    %v97 = vpop.f32.mrb[0].mxu0
    %v98 = vadd.f32 0.0, %v97
    %v99 = vpop.f32.mrb[0].mxu0
    %v100 = vpop.f32.mrb[0].mxu0
    %v101 = vpop.f32.mrb[0].mxu0
    %102 = vdwg.mxu0
    %v105 = vunpack.c.l.b16 %v52
    %v106 = vunpack.c.l.b16 %v53
    %v107 = vpack.c.b16 %v106, %v105
    %vm109 = vcmask 130048
    %v111 = vsel %vm109, %v49, 0
    %113 = vmatprep.subr.bf16.mxu0 0
    %114 = vmatpush1.bf16.msra.mxu0 %v107
    %115 = vmatprep.subr.bf16.mxu0 0
    %116 = vmatpush1.bf16.msra.mxu0 0
    %117 = vmatprep.subr.bf16.mxu0 0
    %118 = vmatpush1.bf16.msra.mxu0 0
    %119 = vmatprep.subr.bf16.mxu0 0
    %120 = vmatpush1.bf16.msra.mxu0 0
    %121 = vmatprep.subr.bf16.mxu0 0
    %122 = vmatpush1.bf16.msra.mxu0 0
    %123 = vmatprep.subr.bf16.mxu0 0
    %124 = vmatpush1.bf16.msra.mxu0 0
    %125 = vmatprep.subr.bf16.mxu0 0
    %126 = vmatpush1.bf16.msra.mxu0 0
    %127 = vmatprep.subr.bf16.mxu0 0
    %128 = vmatpush1.bf16.msra.mxu0 0
    %129 = vmatprep.subr.bf16.mxu0 0
    %130 = vmatpush1.bf16.msra.mxu0 0
    %131 = vmatprep.subr.bf16.mxu0 0
    %132 = vmatpush1.bf16.msra.mxu0 0
    %133 = vmatprep.subr.bf16.mxu0 0
    %134 = vmatpush1.bf16.msra.mxu0 0
    %135 = vmatprep.subr.bf16.mxu0 0
    %136 = vmatpush1.bf16.msra.mxu0 0
    %137 = vmatprep.subr.bf16.mxu0 0
    %138 = vmatpush1.bf16.msra.mxu0 0
    %139 = vmatprep.subr.bf16.mxu0 0
    %140 = vmatpush1.bf16.msra.mxu0 0
    %141 = vmatprep.subr.bf16.mxu0 0
    %142 = vmatpush1.bf16.msra.mxu0 0
    %143 = vmatprep.subr.bf16.mxu0 0
    %144 = vmatpush1.bf16.msra.mxu0 0
    %145 = vmatprep.mubr.bf16.mxu0 0
    %146 = vmatmul.mubr.bf16.gmra.mrb[0].mxu0 %v111
    %v147 = vpop.f32.mrb[0].mxu0
    %v148 = vadd.f32 %v98, %v147
    %v149 = vpop.f32.mrb[0].mxu0
    %v150 = vpop.f32.mrb[0].mxu0
    %v151 = vpop.f32.mrb[0].mxu0
    %152 = vdwg.mxu0
    %v153 = vld [vmem:[%s4] sm:$0x1]
    %v155 = vlaneseq
    %v156 = vshrl.u32 %v155, 7
    %v157 = vsub.s32 0, %v156
    %v158 = vrot.slane %v153, %v157
    %v160 = vadd.f32 %v148, %v158
    %v161 = vmax.f32 %v160, 0.0
    %v162 = vpack.c.bf16 %v161, %v161
    %v163 = vld [vmem:[#allocation3] sm:$0xff]
    %v164 = vld [vmem:[#allocation3 + $0x8] sm:$0xff]
    %v165 = vld [vmem:[#allocation3 + $0x10] sm:$0xff]
    %v166 = vld [vmem:[#allocation3 + $0x18] sm:$0xff]
    %v167 = vld [vmem:[#allocation3 + $0x20] sm:$0xff]
    %v168 = vld [vmem:[#allocation3 + $0x28] sm:$0xff]
    %v169 = vld [vmem:[#allocation3 + $0x30] sm:$0xff]
    %v170 = vld [vmem:[#allocation3 + $0x38] sm:$0xff]
    %v171 = vld [vmem:[#allocation3 + $0x40] sm:$0xff]
    %v172 = vld [vmem:[#allocation3 + $0x48] sm:$0xff]
    %v173 = vld [vmem:[#allocation3 + $0x50] sm:$0xff]
    %v174 = vld [vmem:[#allocation3 + $0x58] sm:$0xff]
    %v175 = vld [vmem:[#allocation3 + $0x60] sm:$0xff]
    %v176 = vld [vmem:[#allocation3 + $0x68] sm:$0xff]
    %v177 = vld [vmem:[#allocation3 + $0x70] sm:$0xff]
    %v178 = vld [vmem:[#allocation3 + $0x78] sm:$0xff]
    %v179 = vld [vmem:[%s6] sm:$0x3]
    %v181 = vlaneseq
    %v182 = vshrl.u32 %v181, 7
    %v183 = vsub.s32 0, %v182
    %v184 = vrot.slane %v179, %v183
    %v185 = vlaneseq
    %v186 = vshrl.u32 %v185, 7
    %v187 = vsub.s32 1, %v186
    %v188 = vrot.slane %v179, %v187
    %v207 = vunpack.c.l.b16 %v163
    %v208 = vunpack.c.h.b16 %v163
    %v209 = vunpack.c.l.b16 %v164
    %v210 = vunpack.c.h.b16 %v164
    %v211 = vunpack.c.l.b16 %v165
    %v212 = vunpack.c.h.b16 %v165
    %v213 = vunpack.c.l.b16 %v166
    %v214 = vunpack.c.h.b16 %v166
    %v215 = vunpack.c.l.b16 %v167
    %v216 = vunpack.c.h.b16 %v167
    %v217 = vunpack.c.l.b16 %v168
    %v218 = vunpack.c.h.b16 %v168
    %v219 = vunpack.c.l.b16 %v169
    %v220 = vunpack.c.h.b16 %v169
    %v221 = vunpack.c.l.b16 %v170
    %v222 = vunpack.c.h.b16 %v170
    %v223 = vunpack.c.l.b16 %v171
    %v224 = vunpack.c.h.b16 %v171
    %v225 = vunpack.c.l.b16 %v172
    %v226 = vunpack.c.h.b16 %v172
    %v227 = vunpack.c.l.b16 %v173
    %v228 = vunpack.c.h.b16 %v173
    %v229 = vunpack.c.l.b16 %v174
    %v230 = vunpack.c.h.b16 %v174
    %v231 = vunpack.c.l.b16 %v175
    %v232 = vunpack.c.h.b16 %v175
    %v233 = vunpack.c.l.b16 %v176
    %v234 = vunpack.c.h.b16 %v176
    %v235 = vunpack.c.l.b16 %v177
    %v236 = vunpack.c.h.b16 %v177
    %v237 = vunpack.c.l.b16 %v178
    %v238 = vunpack.c.h.b16 %v178
    %v239 = vpack.c.b16 %v209, %v207
    %v240 = vpack.c.b16 %v210, %v208
    %v241 = vpack.c.b16 %v213, %v211
    %v242 = vpack.c.b16 %v214, %v212
    %v243 = vpack.c.b16 %v217, %v215
    %v244 = vpack.c.b16 %v218, %v216
    %v245 = vpack.c.b16 %v221, %v219
    %v246 = vpack.c.b16 %v222, %v220
    %v247 = vpack.c.b16 %v225, %v223
    %v248 = vpack.c.b16 %v226, %v224
    %v249 = vpack.c.b16 %v229, %v227
    %v250 = vpack.c.b16 %v230, %v228
    %v251 = vpack.c.b16 %v233, %v231
    %v252 = vpack.c.b16 %v234, %v232
    %v253 = vpack.c.b16 %v237, %v235
    %v254 = vpack.c.b16 %v238, %v236
    %271 = vmatprep.subr.bf16.mxu0 %v240
    %272 = vmatpush1.bf16.msra.mxu0 %v239
    %273 = vmatprep.subr.bf16.mxu0 %v242
    %274 = vmatpush1.bf16.msra.mxu0 %v241
    %275 = vmatprep.subr.bf16.mxu0 %v244
    %276 = vmatpush1.bf16.msra.mxu0 %v243
    %277 = vmatprep.subr.bf16.mxu0 %v246
    %278 = vmatpush1.bf16.msra.mxu0 %v245
    %279 = vmatprep.subr.bf16.mxu0 %v248
    %280 = vmatpush1.bf16.msra.mxu0 %v247
    %281 = vmatprep.subr.bf16.mxu0 %v250
    %282 = vmatpush1.bf16.msra.mxu0 %v249
    %283 = vmatprep.subr.bf16.mxu0 %v252
    %284 = vmatpush1.bf16.msra.mxu0 %v251
    %285 = vmatprep.subr.bf16.mxu0 %v254
    %286 = vmatpush1.bf16.msra.mxu0 %v253
    %287 = vmatprep.subr.bf16.mxu0 0
    %288 = vmatpush1.bf16.msra.mxu0 0
    %289 = vmatprep.subr.bf16.mxu0 0
    %290 = vmatpush1.bf16.msra.mxu0 0
    %291 = vmatprep.subr.bf16.mxu0 0
    %292 = vmatpush1.bf16.msra.mxu0 0
    %293 = vmatprep.subr.bf16.mxu0 0
    %294 = vmatpush1.bf16.msra.mxu0 0
    %295 = vmatprep.subr.bf16.mxu0 0
    %296 = vmatpush1.bf16.msra.mxu0 0
    %297 = vmatprep.subr.bf16.mxu0 0
    %298 = vmatpush1.bf16.msra.mxu0 0
    %299 = vmatprep.subr.bf16.mxu0 0
    %300 = vmatpush1.bf16.msra.mxu0 0
    %301 = vmatprep.subr.bf16.mxu0 0
    %302 = vmatpush1.bf16.msra.mxu0 0
    %303 = vmatprep.mubr.bf16.mxu0 0
    %304 = vmatmul.mubr.bf16.gmra.mrb[0].mxu0 %v162
    %v305 = vpop.f32.mrb[0].mxu0
    %v306 = vadd.f32 %v184, %v305
    %v307 = vpop.f32.mrb[0].mxu0
    %v308 = vadd.f32 %v188, %v307
    %v309 = vpop.f32.mrb[0].mxu0
    %v310 = vpop.f32.mrb[0].mxu0
    %311 = vdwg.mxu0
    %v312 = vmax.f32 %v306, 0.0
    %v313 = vmax.f32 %v308, 0.0
    %v314 = vld [vmem:[%s7] sm:$0x3]
    %v316 = vlaneseq
    %v317 = vshrl.u32 %v316, 7
    %v318 = vsub.s32 0, %v317
    %v319 = vrot.slane %v314, %v318
    %v320 = vlaneseq
    %v321 = vshrl.u32 %v320, 7
    %v322 = vsub.s32 1, %v321
    %v323 = vrot.slane %v314, %v322
    %v326 = vmul.f32 %v312, %v319
    %v327 = vmul.f32 %v313, %v323
    %v328 = vadd.f32 %v326, %v327
    %329 = vadd.xlane.f32.xlu0 %v328
    %v330 = vpop.xlane.xlu0 %329
    %s331 = sld [smem:[#allocation2]]
    %v332 = vstv %s331
    %v333 = vadd.f32 %v330, %v332
    %vm334 = vcmask 7168
    %335 = vst.msk [vmem:[%s9] sm:$0xff] %vm334, %v333
    // Predicated region
    $region42: #{tpu_custom_call.1} parent=1 // pred_check
      _
    $region43: #{tpu_custom_call.1} parent=1 // pred_check_branch
      %337 = sbr.rel (0) target = $region45
    $region44: #{tpu_custom_call.1} parent=1 // pred_region
      _
    $region45: #{tpu_custom_call.1} parent=1 // pred_fallthru
      _
    // Predicated region
    $region46: #{tpu_custom_call.1} parent=1 // pred_check
      _
    $region47: #{tpu_custom_call.1} parent=1 // pred_check_branch
      %339 = sbr.rel (0) target = $region49
    $region48: #{tpu_custom_call.1} parent=1 // pred_region
      _
    $region49: #{tpu_custom_call.1} parent=1 // pred_fallthru
      _
    %340 = vsyncpa [#allocation4], 1

</llo_original>
